<compile_context>
chip_gen: v6e
topology: v6e:2x2x1
jax: 0.10.0
libtpu: 0.0.40
codegen_flags: <defaults>
</compile_context>

<pallas_src>
import functools

import jax
import jax.numpy as jnp
from jax.experimental import pallas as pl
from jax.experimental.pallas import tpu as pltpu


def _mxu_precision(dtype):
    # f32 operands: request the full-precision contraction (default is reduced
    # precision on the MXU).  bf16 operands: native single-pass bf16 MXU.
    return jax.lax.Precision.HIGHEST if dtype == jnp.float32 else None


def _policy_kernel_2act(xt_ref, w1_ref, b1_ref, w2_ref, b2_ref, o_ref):
    """Feature-major tiles: xt (s,TB), w1 (h,s), b1 (h,1), w2 (2,h), b2 (2,1), o (2,TB)."""
    prec = _mxu_precision(xt_ref.dtype)
    # TODO(synk): with K=4/K=16 the MXU is <12% utilized; a VPU broadcast-FMA
    # fallback would avoid MXU push/drain latency, but this kernel is DMA-bound
    # so the jnp.dot path is kept for simplicity.
    h = jnp.dot(w1_ref[...], xt_ref[...],
                preferred_element_type=jnp.float32, precision=prec)
    h = jnp.maximum(h + b1_ref[...], 0.0)                       # (h, TB) f32
    logits = jnp.dot(w2_ref[...], h.astype(w2_ref.dtype),
                     preferred_element_type=jnp.float32, precision=prec)
    logits = logits + b2_ref[...]                               # (2, TB) f32
    # Exact pairwise softmax: element-wise on the two sublane rows, no
    # cross-lane reductions, exact divide, ONE full-block store.
    l0 = logits[0:1, :]
    l1 = logits[1:2, :]
    m = jnp.maximum(l0, l1)                                     # (1, TB)
    e = jnp.exp(logits - m)                                     # (2, TB)
    denom = e[0:1, :] + e[1:2, :]                               # (1, TB)
    o_ref[...] = (e / denom).astype(o_ref.dtype)


def _policy_kernel_nact(xt_ref, w1_ref, b1_ref, w2_ref, b2_ref, o_ref):
    """Generic a_size path: softmax over the (small) sublane axis."""
    prec = _mxu_precision(xt_ref.dtype)
    h = jnp.dot(w1_ref[...], xt_ref[...],
                preferred_element_type=jnp.float32, precision=prec)
    h = jnp.maximum(h + b1_ref[...], 0.0)
    logits = jnp.dot(w2_ref[...], h.astype(w2_ref.dtype),
                     preferred_element_type=jnp.float32, precision=prec)
    logits = logits + b2_ref[...]
    m = jnp.max(logits, axis=0, keepdims=True)
    e = jnp.exp(logits - m)
    denom = jnp.sum(e, axis=0, keepdims=True)
    o_ref[...] = (e / denom).astype(o_ref.dtype)


def _lane_round_up(n):
    return 128 * pl.cdiv(n, 128)


@functools.partial(jax.jit, static_argnames=("tile_b", "compute_dtype"))
def simple_policy_forward_t(xt, w1, b1, w2, b2, *, tile_b=16384,
                            compute_dtype=jnp.bfloat16):
    """SimplePolicy.forward on feature-major activations (no wrapper transposes).

    xt: (s_size, B)           feature-major input (batch on lanes)
    w1: (h_size, s_size), b1: (h_size,)   # PyTorch fc1.weight / fc1.bias
    w2: (a_size, h_size), b2: (a_size,)   # PyTorch fc2.weight / fc2.bias
    Returns (a_size, B) float32 action probabilities.
    """
    s_size, B = xt.shape
    h_size = w1.shape[0]
    a_size = w2.shape[0]

    cd = jnp.dtype(compute_dtype) if compute_dtype is not None else xt.dtype

    # Batch tile: multiple of 128 lanes (unmasked vector stores), clamped to the
    # lane-padded batch.  Large tiles amortize the ~0.35 us per-grid-step cost.
    b_ceil = _lane_round_up(B)
    tb = min(_lane_round_up(tile_b), b_ceil)
    # Megacore: if the whole batch fits one tile but can be split into two
    # lane-aligned halves, split it so "parallel" shards across v7x's 2 TCs.
    if tb == b_ceil and b_ceil >= 256:
        tb = 128 * pl.cdiv(b_ceil // 128, 2)
    grid_n = pl.cdiv(b_ceil, tb)
    b_padded = grid_n * tb

    xt_c = xt.astype(cd)                                   # (s_size, B)
    if b_padded != B:
        # Padded columns are zeros -> logits = relu(b1)-derived, finite; their
        # softmax output is well defined and sliced away below (never read).
        xt_c = jnp.pad(xt_c, ((0, 0), (0, b_padded - B)))
    w1c = w1.astype(cd)                                    # (h_size, s_size)
    w2c = w2.astype(cd)                                    # (a_size, h_size)
    # Biases stay f32 (VPU/EUP math is f32 even on the bf16 path).
    # TODO(synk): could fold biases into the matmuls (ones-row trick); low value
    # once tiles are large, so kept as a plain broadcast add.
    b1c = b1.reshape(h_size, 1).astype(jnp.float32)
    b2c = b2.reshape(a_size, 1).astype(jnp.float32)

    kernel = _policy_kernel_2act if a_size == 2 else _policy_kernel_nact

    flops = 2 * B * (s_size * h_size + h_size * a_size)
    bytes_accessed = (
        xt_c.size * xt_c.dtype.itemsize            # x in
        + a_size * b_padded * 4                    # probs out (f32)
        + w1c.size * w1c.dtype.itemsize + w2c.size * w2c.dtype.itemsize
        + (h_size + a_size) * 4                    # biases
    )

    out_t = pl.pallas_call(
        kernel,
        out_shape=jax.ShapeDtypeStruct((a_size, b_padded), jnp.float32),
        grid_spec=pltpu.PrefetchScalarGridSpec(
            num_scalar_prefetch=0,
            grid=(grid_n,),
            in_specs=[
                pl.BlockSpec((s_size, tb), lambda i: (0, i)),      # x streams over B
                pl.BlockSpec((h_size, s_size), lambda i: (0, 0)),  # weights stay resident
                pl.BlockSpec((h_size, 1), lambda i: (0, 0)),
                pl.BlockSpec((a_size, h_size), lambda i: (0, 0)),
                pl.BlockSpec((a_size, 1), lambda i: (0, 0)),
            ],
            out_specs=pl.BlockSpec((a_size, tb), lambda i: (0, i)),
        ),
        compiler_params=pltpu.CompilerParams(
            dimension_semantics=("parallel",),       # batch tiles are independent
            vmem_limit_bytes=32 * 1024 * 1024,       # fits v7x's 64 MiB physical VMEM
        ),
        cost_estimate=pl.CostEstimate(
            flops=flops,
            transcendentals=a_size * b_padded,
            bytes_accessed=bytes_accessed,
        ),
    )(xt_c, w1c, b1c, w2c, b2c)

    return out_t[:, :B]                                    # (a_size, B)


@functools.partial(jax.jit, static_argnames=("tile_b", "compute_dtype"))
def simple_policy_forward(x, w1, b1, w2, b2, *, tile_b=16384,
                          compute_dtype=jnp.bfloat16):
    """PyTorch-layout convenience wrapper: x (B, s_size) -> probs (B, a_size).

    The boundary transposes here cost one extra pass over the (tiny) x/probs
    tensors; performance-critical callers should keep activations feature-major
    and call simple_policy_forward_t directly.
    """
    return simple_policy_forward_t(
        x.T, w1, b1, w2, b2, tile_b=tile_b, compute_dtype=compute_dtype
    ).T


def init_params(key, s_size=4, h_size=16, a_size=2):
    """PyTorch-style uniform(-1/sqrt(fan_in), 1/sqrt(fan_in)) init, PyTorch layout."""
    k1, k2, k3, k4 = jax.random.split(key, 4)
    bound1 = 1.0 / (s_size ** 0.5)
    bound2 = 1.0 / (h_size ** 0.5)
    w1 = jax.random.uniform(k1, (h_size, s_size), jnp.float32, -bound1, bound1)
    b1 = jax.random.uniform(k2, (h_size,), jnp.float32, -bound1, bound1)
    w2 = jax.random.uniform(k3, (a_size, h_size), jnp.float32, -bound2, bound2)
    b2 = jax.random.uniform(k4, (a_size,), jnp.float32, -bound2, bound2)
    return w1, b1, w2, b2


if __name__ == "__main__":
    s_size, h_size, a_size = 4, 16, 2
    # Batched env/timestep rows; 1000 exercises the lane padding path and the
    # megacore split (b_ceil=1024 -> tb=512 -> grid=(2,)) while staying tiny.
    batch = 1000

    key = jax.random.PRNGKey(0)
    kx, kp = jax.random.split(key)
    x = jax.random.normal(kx, (batch, s_size), jnp.float32)
    w1, b1, w2, b2 = init_params(kp, s_size, h_size, a_size)

    # Pure-JAX f32 reference of the PyTorch forward.
    ref = jax.nn.softmax(jnp.maximum(x @ w1.T + b1, 0.0) @ w2.T + b2, axis=-1)

    # 1) Default (bf16 MXU operands, f32 accumulation / softmax).
    probs = simple_policy_forward(x, w1, b1, w2, b2)
    jax.block_until_ready(probs)
    assert probs.shape == (batch, a_size)
    assert jnp.allclose(probs, ref, atol=5e-2), "bf16 path mismatch vs reference"
    assert jnp.allclose(jnp.sum(probs, axis=-1), 1.0, atol=1e-5)

    # 2) Full f32 path (precision=HIGHEST on the MXU) -> tight agreement.
    probs_f32 = simple_policy_forward(x, w1, b1, w2, b2, compute_dtype=jnp.float32)
    jax.block_until_ready(probs_f32)
    assert jnp.allclose(probs_f32, ref, atol=1e-3), "f32 path mismatch vs reference"
    assert jnp.allclose(jnp.sum(probs_f32, axis=-1), 1.0, atol=1e-5)

    # 3) Feature-major API (no wrapper transposes) agrees with the torch-layout one.
    probs_t = simple_policy_forward_t(x.T, w1, b1, w2, b2)
    jax.block_until_ready(probs_t)
    assert jnp.allclose(probs_t.T, probs, atol=1e-6)

    # TODO(synk): SimplePolicy.act() (Categorical sampling / log_prob) is host-side
    # RL glue, not part of forward(), and is left to plain JAX.

    print("KERNEL_OK")
</pallas_src>

<mosaic_0001>
module attributes {stable_mosaic.version = 11 : i64} {
  func.func @_policy_kernel_2act(%arg0: i32, %arg1: memref<4x512xbf16, #tpu.memory_space<vmem>>, %arg2: memref<16x4xbf16, #tpu.memory_space<vmem>>, %arg3: memref<16x1xf32, #tpu.memory_space<vmem>>, %arg4: memref<2x16xbf16, #tpu.memory_space<vmem>>, %arg5: memref<2x1xf32, #tpu.memory_space<vmem>>, %arg6: memref<2x512xf32, #tpu.memory_space<vmem>>) attributes {dimension_semantics = [#tpu.dimension_semantics<parallel>], iteration_bounds = array<i64: 2>, scalar_prefetch = 0 : i64, scratch_operands = 0 : i64, tpu.core_type = #tpu.core_type<tc>, window_params = [{transform_indices = @transform_0, window_bounds = array<i64: 4, 512>}, {pipeline_mode = #tpu.pipeline_mode<synchronous>, transform_indices = @transform_1, window_bounds = array<i64: 16, 4>}, {pipeline_mode = #tpu.pipeline_mode<synchronous>, transform_indices = @transform_2, window_bounds = array<i64: 16, 1>}, {pipeline_mode = #tpu.pipeline_mode<synchronous>, transform_indices = @transform_3, window_bounds = array<i64: 2, 16>}, {pipeline_mode = #tpu.pipeline_mode<synchronous>, transform_indices = @transform_4, window_bounds = array<i64: 2, 1>}, {transform_indices = @transform_5, window_bounds = array<i64: 2, 512>}]} {
    %c0 = arith.constant 0 : index
    %c0_0 = arith.constant 0 : index
    %0 = vector.load %arg2[%c0, %c0_0] : memref<16x4xbf16, #tpu.memory_space<vmem>>, vector<16x4xbf16>
    %c0_1 = arith.constant 0 : index
    %c0_2 = arith.constant 0 : index
    %1 = vector.load %arg1[%c0_1, %c0_2] : memref<4x512xbf16, #tpu.memory_space<vmem>>, vector<4x512xbf16>
    %cst = arith.constant dense<0.000000e+00> : vector<16x512xf32>
    %2 = tpu.matmul %0, %1, %cst {dimension_numbers = #tpu.dot_dimension_numbers<[1], [0], [0], [1], [0, 0, 1, 1], [], []>} : vector<16x4xbf16>, vector<4x512xbf16>, vector<16x512xf32> -> vector<16x512xf32>
    %c0_3 = arith.constant 0 : index
    %c0_4 = arith.constant 0 : index
    %3 = vector.load %arg3[%c0_3, %c0_4] : memref<16x1xf32, #tpu.memory_space<vmem>>, vector<16x1xf32>
    %4 = vector.broadcast %3 : vector<16x1xf32> to vector<16x512xf32>
    %5 = arith.addf %2, %4 : vector<16x512xf32>
    %cst_5 = arith.constant 0.000000e+00 : f32
    %6 = vector.broadcast %cst_5 : f32 to vector<16x512xf32>
    %7 = arith.maximumf %5, %6 : vector<16x512xf32>
    %c0_6 = arith.constant 0 : index
    %c0_7 = arith.constant 0 : index
    %8 = vector.load %arg4[%c0_6, %c0_7] : memref<2x16xbf16, #tpu.memory_space<vmem>>, vector<2x16xbf16>
    %9 = arith.truncf %7 : vector<16x512xf32> to vector<16x512xbf16>
    %cst_8 = arith.constant dense<0.000000e+00> : vector<2x512xf32>
    %10 = tpu.matmul %8, %9, %cst_8 {dimension_numbers = #tpu.dot_dimension_numbers<[1], [0], [0], [1], [0, 0, 1, 1], [], []>} : vector<2x16xbf16>, vector<16x512xbf16>, vector<2x512xf32> -> vector<2x512xf32>
    %c0_9 = arith.constant 0 : index
    %c0_10 = arith.constant 0 : index
    %11 = vector.load %arg5[%c0_9, %c0_10] : memref<2x1xf32, #tpu.memory_space<vmem>>, vector<2x1xf32>
    %12 = vector.broadcast %11 : vector<2x1xf32> to vector<2x512xf32>
    %13 = arith.addf %10, %12 : vector<2x512xf32>
    %14 = vector.extract_strided_slice %13 {offsets = [0, 0], sizes = [1, 512], strides = [1, 1]} : vector<2x512xf32> to vector<1x512xf32>
    %15 = vector.extract_strided_slice %13 {offsets = [1, 0], sizes = [1, 512], strides = [1, 1]} : vector<2x512xf32> to vector<1x512xf32>
    %16 = arith.maximumf %14, %15 : vector<1x512xf32>
    %17 = vector.broadcast %16 : vector<1x512xf32> to vector<2x512xf32>
    %18 = arith.subf %13, %17 : vector<2x512xf32>
    %19 = math.exp %18 : vector<2x512xf32>
    %20 = vector.extract_strided_slice %19 {offsets = [0, 0], sizes = [1, 512], strides = [1, 1]} : vector<2x512xf32> to vector<1x512xf32>
    %21 = vector.extract_strided_slice %19 {offsets = [1, 0], sizes = [1, 512], strides = [1, 1]} : vector<2x512xf32> to vector<1x512xf32>
    %22 = arith.addf %20, %21 : vector<1x512xf32>
    %23 = vector.broadcast %22 : vector<1x512xf32> to vector<2x512xf32>
    %24 = arith.divf %19, %23 : vector<2x512xf32>
    %c0_11 = arith.constant 0 : index
    %c0_12 = arith.constant 0 : index
    %25 = vector.load %arg6[%c0_11, %c0_12] : memref<2x512xf32, #tpu.memory_space<vmem>>, vector<2x512xf32>
    tpu.vector_store %arg6[%c0_11, %c0_12], %24 {strides = array<i32>} : memref<2x512xf32, #tpu.memory_space<vmem>>, vector<2x512xf32>,
    return
  }
  func.func @transform_0(%arg0: i32) -> (i32, i32) {
    %c0_i32 = arith.constant 0 : i32
    %c0_i32_0 = arith.constant 0 : i32
    return %c0_i32, %arg0 : i32, i32
  }
  func.func @transform_1(%arg0: i32) -> (i32, i32) {
    %c0_i32 = arith.constant 0 : i32
    %c0_i32_0 = arith.constant 0 : i32
    %c0_i32_1 = arith.constant 0 : i32
    return %c0_i32, %c0_i32_0 : i32, i32
  }
  func.func @transform_2(%arg0: i32) -> (i32, i32) {
    %c0_i32 = arith.constant 0 : i32
    %c0_i32_0 = arith.constant 0 : i32
    %c0_i32_1 = arith.constant 0 : i32
    return %c0_i32, %c0_i32_0 : i32, i32
  }
  func.func @transform_3(%arg0: i32) -> (i32, i32) {
    %c0_i32 = arith.constant 0 : i32
    %c0_i32_0 = arith.constant 0 : i32
    %c0_i32_1 = arith.constant 0 : i32
    return %c0_i32, %c0_i32_0 : i32, i32
  }
  func.func @transform_4(%arg0: i32) -> (i32, i32) {
    %c0_i32 = arith.constant 0 : i32
    %c0_i32_0 = arith.constant 0 : i32
    %c0_i32_1 = arith.constant 0 : i32
    return %c0_i32, %c0_i32_0 : i32, i32
  }
  func.func @transform_5(%arg0: i32) -> (i32, i32) {
    %c0_i32 = arith.constant 0 : i32
    %c0_i32_0 = arith.constant 0 : i32
    return %c0_i32, %arg0 : i32, i32
  }
}

</mosaic_0001>

<llo_original>
// kernel: simple_policy_forward_t.1
$region0: #{simple_policy_forward_t.1}
  #allocation0 [shape = 'u32[]', space=smem, size = 0x4, offset = 0x4, fixed_abs, tag = 'smem constant byte address 0x4 - core index']
  #allocation1 [shape = 'u32[144,128]{1,0:T(1,128)}', space=vmem, size = 0x12000, scoped, tag = 'internal scratch']
  %s0 = inlined_call_operand.vmem [shape: bf16[4,1024], index: 0, kind: input, shape index: {}]
  %s1 = inlined_call_operand.vmem [shape: bf16[16,4], index: 1, kind: input, shape index: {}]
  %s2 = inlined_call_operand.vmem [shape: f32[16,1], index: 2, kind: input, shape index: {}]
  %s3 = inlined_call_operand.vmem [shape: bf16[2,16], index: 3, kind: input, shape index: {}]
  %s4 = inlined_call_operand.vmem [shape: f32[2,1], index: 4, kind: input, shape index: {}]
  %s5 = inlined_call_operand.hbm [shape: f32[2,1024], index: 5, kind: output, shape index: {}]
  %s6 = sld [smem:[#allocation0]]
  $region53: #{simple_policy_forward_t.1} parent=0
    _
  %s8 = ssub.s32 1, %s6
  %s9 = scalar_select 0, %s8, %s6
  $region1: #{simple_policy_forward_t.1} parent=0
    #allocation2 [shape = 'u8[8192]{0}', space=vmem, size = 0x2000, scoped, tag = 'output window, operand 0']
    #allocation3 [shape = 's32[2]{0}', space=sflag, size = 0x8, scoped, tag = 'scoped memory for simple_policy_forward_t.1']
    %10 = vsyncpa [#allocation3], 0
    %s11 = scalar_lea.sflag [#allocation3], 1
    %12 = vsyncpa %s11, 0
    loop: start=0, step=1, limit=4
    $region2: #{simple_policy_forward_t.1} parent=1 // loop_pre_header
      _
    $region3: #{simple_policy_forward_t.1} parent=1 // loop_header
      %s14 = sphi 0, %s18
      %p15 = scmp.ge.s32.totalorder %s14, 4
      %s24 = sphi 0, %s26
      %s27 = sphi 0, %s24
      %s28 = sphi 0, %s27
      %s44 = sphi 0, %s28
      %s48 = sphi 0, %s48
      %s50 = sphi 0, %s48
      %s51 = sphi 0, %s50
      %s65 = sphi 0, %s51
      %s69 = sphi 0, %s69
      %s71 = sphi 0, %s69
      %s72 = sphi 0, %s71
      %s86 = sphi 0, %s72
      %s90 = sphi 0, %s90
      %s92 = sphi 0, %s90
      %s93 = sphi 0, %s92
      %s107 = sphi 0, %s93
      %s111 = sphi 0, %s111
      %s113 = sphi 0, %s111
      %s114 = sphi 0, %s113
      %s128 = sphi 0, %s114
      %s134 = sphi 0, %s136
      %s137 = sphi 0, %s134
      %s138 = sphi 0, %s137
      %s154 = sphi 0, %s138
    $region4: #{simple_policy_forward_t.1} parent=1 // loop_header_branch
      %17 = sbr.rel (%p15) target = $region8
    $region5: #{simple_policy_forward_t.1} parent=1 // loop_body
      %s19 = ssub.s32 %s14, 1
      %s20 = ssub.s32 %s14, 2
      %s21 = sadd.s32 %s14, 1
      %s22 = ssub.s32 %s14, %s21
      %p23 = scmp.eq.s32.totalorder %s22, 0
      %s25 = sadd.s32 %s24, 1
      %s26 = scalar_select %p23, %s24, %s25
      %p29 = pneg %p23
      %p30 = scmp.eq.s32.totalorder %s14, 1
      %p31 = por %p29, %p30
      %p32 = scmp.ne.s32.totalorder %s24, %s27
      %p33 = scmp.eq.s32.totalorder %s14, 0
      %p34 = por %p32, %p33
      %p35 = scmp.ne.s32.totalorder %s24, %s27
      %p36 = scmp.eq.s32.totalorder %s19, 1
      %p37 = por %p35, %p36
      %p38 = scmp.ne.s32.totalorder %s27, %s28
      %p39 = scmp.eq.s32.totalorder %s19, 0
      %p40 = por %p38, %p39
      %p41 = scmp.ne.s32.totalorder %s27, %s28
      %p42 = scmp.eq.s32.totalorder %s20, 1
      %p43 = por %p41, %p42
      %p45 = scmp.ne.s32.totalorder %s28, %s44
      %p46 = scmp.eq.s32.totalorder %s20, 0
      %p47 = por %p45, %p46
      %s49 = sadd.s32 %s48, 1
      %p52 = scmp.eq.s32.totalorder %s14, 1
      %p53 = scmp.ne.s32.totalorder %s48, %s50
      %p54 = scmp.eq.s32.totalorder %s14, 0
      %p55 = por %p53, %p54
      %p56 = scmp.ne.s32.totalorder %s48, %s50
      %p57 = scmp.eq.s32.totalorder %s19, 1
      %p58 = por %p56, %p57
      %p59 = scmp.ne.s32.totalorder %s50, %s51
      %p60 = scmp.eq.s32.totalorder %s19, 0
      %p61 = por %p59, %p60
      %p62 = scmp.ne.s32.totalorder %s50, %s51
      %p63 = scmp.eq.s32.totalorder %s20, 1
      %p64 = por %p62, %p63
      %p66 = scmp.ne.s32.totalorder %s51, %s65
      %p67 = scmp.eq.s32.totalorder %s20, 0
      %p68 = por %p66, %p67
      %s70 = sadd.s32 %s69, 1
      %p73 = scmp.eq.s32.totalorder %s14, 1
      %p74 = scmp.ne.s32.totalorder %s69, %s71
      %p75 = scmp.eq.s32.totalorder %s14, 0
      %p76 = por %p74, %p75
      %p77 = scmp.ne.s32.totalorder %s69, %s71
      %p78 = scmp.eq.s32.totalorder %s19, 1
      %p79 = por %p77, %p78
      %p80 = scmp.ne.s32.totalorder %s71, %s72
      %p81 = scmp.eq.s32.totalorder %s19, 0
      %p82 = por %p80, %p81
      %p83 = scmp.ne.s32.totalorder %s71, %s72
      %p84 = scmp.eq.s32.totalorder %s20, 1
      %p85 = por %p83, %p84
      %p87 = scmp.ne.s32.totalorder %s72, %s86
      %p88 = scmp.eq.s32.totalorder %s20, 0
      %p89 = por %p87, %p88
      %s91 = sadd.s32 %s90, 1
      %p94 = scmp.eq.s32.totalorder %s14, 1
      %p95 = scmp.ne.s32.totalorder %s90, %s92
      %p96 = scmp.eq.s32.totalorder %s14, 0
      %p97 = por %p95, %p96
      %p98 = scmp.ne.s32.totalorder %s90, %s92
      %p99 = scmp.eq.s32.totalorder %s19, 1
      %p100 = por %p98, %p99
      %p101 = scmp.ne.s32.totalorder %s92, %s93
      %p102 = scmp.eq.s32.totalorder %s19, 0
      %p103 = por %p101, %p102
      %p104 = scmp.ne.s32.totalorder %s92, %s93
      %p105 = scmp.eq.s32.totalorder %s20, 1
      %p106 = por %p104, %p105
      %p108 = scmp.ne.s32.totalorder %s93, %s107
      %p109 = scmp.eq.s32.totalorder %s20, 0
      %p110 = por %p108, %p109
      %s112 = sadd.s32 %s111, 1
      %p115 = scmp.eq.s32.totalorder %s14, 1
      %p116 = scmp.ne.s32.totalorder %s111, %s113
      %p117 = scmp.eq.s32.totalorder %s14, 0
      %p118 = por %p116, %p117
      %p119 = scmp.ne.s32.totalorder %s111, %s113
      %p120 = scmp.eq.s32.totalorder %s19, 1
      %p121 = por %p119, %p120
      %p122 = scmp.ne.s32.totalorder %s113, %s114
      %p123 = scmp.eq.s32.totalorder %s19, 0
      %p124 = por %p122, %p123
      %p125 = scmp.ne.s32.totalorder %s113, %s114
      %p126 = scmp.eq.s32.totalorder %s20, 1
      %p127 = por %p125, %p126
      %p129 = scmp.ne.s32.totalorder %s114, %s128
      %p130 = scmp.eq.s32.totalorder %s20, 0
      %p131 = por %p129, %p130
      %s132 = ssub.s32 %s14, %s21
      %p133 = scmp.eq.s32.totalorder %s132, 0
      %s135 = sadd.s32 %s134, 1
      %s136 = scalar_select %p133, %s134, %s135
      %p139 = pneg %p133
      %p140 = scmp.eq.s32.totalorder %s14, 1
      %p141 = por %p139, %p140
      %p142 = scmp.ne.s32.totalorder %s134, %s137
      %p143 = scmp.eq.s32.totalorder %s14, 0
      %p144 = por %p142, %p143
      %p145 = scmp.ne.s32.totalorder %s134, %s137
      %p146 = scmp.eq.s32.totalorder %s19, 1
      %p147 = por %p145, %p146
      %p148 = scmp.ne.s32.totalorder %s137, %s138
      %p149 = scmp.eq.s32.totalorder %s19, 0
      %p150 = por %p148, %p149
      %p151 = scmp.ne.s32.totalorder %s137, %s138
      %p152 = scmp.eq.s32.totalorder %s20, 1
      %p153 = por %p151, %p152
      %p155 = scmp.ne.s32.totalorder %s138, %s154
      %p156 = scmp.eq.s32.totalorder %s20, 0
      %p157 = por %p155, %p156
      %p158 = scmp.le.s32.totalorder 1, %s14
      %p159 = scmp.lt.s32.totalorder %s14, 3
      %p160 = pnand %p158, %p159
      %p161 = pneg %p160
      // Predicated region
      $region9: #{simple_policy_forward_t.1} parent=5 // pred_check
        _
      $region10: #{simple_policy_forward_t.1} parent=5 // pred_check_branch
        %163 = sbr.rel (%p160) target = $region12
      $region11: #{simple_policy_forward_t.1} parent=5 // pred_region
        %s164 = ssub.s32 %s14, 1
        // Predicated region
        $region13: #{simple_policy_forward_t.1} parent=11 // pred_check
          %p165 = pneg %p61
        $region14: #{simple_policy_forward_t.1} parent=11 // pred_check_branch
          %167 = sbr.rel (%p165) target = $region16
        $region15: #{simple_policy_forward_t.1} parent=11 // pred_region
          _
        $region16: #{simple_policy_forward_t.1} parent=11 // pred_fallthru
          _
        // Predicated region
        $region17: #{simple_policy_forward_t.1} parent=11 // pred_check
          %p168 = pneg %p82
        $region18: #{simple_policy_forward_t.1} parent=11 // pred_check_branch
          %170 = sbr.rel (%p168) target = $region20
        $region19: #{simple_policy_forward_t.1} parent=11 // pred_region
          _
        $region20: #{simple_policy_forward_t.1} parent=11 // pred_fallthru
          _
        // Predicated region
        $region21: #{simple_policy_forward_t.1} parent=11 // pred_check
          %p171 = pneg %p103
        $region22: #{simple_policy_forward_t.1} parent=11 // pred_check_branch
          %173 = sbr.rel (%p171) target = $region24
        $region23: #{simple_policy_forward_t.1} parent=11 // pred_region
          _
        $region24: #{simple_policy_forward_t.1} parent=11 // pred_fallthru
          _
        // Predicated region
        $region25: #{simple_policy_forward_t.1} parent=11 // pred_check
          %p174 = pneg %p124
        $region26: #{simple_policy_forward_t.1} parent=11 // pred_check_branch
          %176 = sbr.rel (%p174) target = $region28
        $region27: #{simple_policy_forward_t.1} parent=11 // pred_region
          _
        $region28: #{simple_policy_forward_t.1} parent=11 // pred_fallthru
          _
      $region12: #{simple_policy_forward_t.1} parent=5 // pred_fallthru
        _
      %p177 = scmp.lt.s32.totalorder %s14, 2
      // Predicated region
      $region29: #{simple_policy_forward_t.1} parent=5 // pred_check
        %p178 = pneg %p177
      $region30: #{simple_policy_forward_t.1} parent=5 // pred_check_branch
        %180 = sbr.rel (%p178) target = $region32
      $region31: #{simple_policy_forward_t.1} parent=5 // pred_region
        // Predicated region
        $region33: #{simple_policy_forward_t.1} parent=31 // pred_check
          %p181 = pneg %p34
        $region34: #{simple_policy_forward_t.1} parent=31 // pred_check_branch
          %183 = sbr.rel (%p181) target = $region36
        $region35: #{simple_policy_forward_t.1} parent=31 // pred_region
          %s184 = smul.u32 4, %s14
          %p185 = scmp.lt.s32.totalorder %s184, 7
          %s186 = scalar_select %p185, %s184, 7
          %s187 = smul.addr %s186, 2
          %s188 = scalar_lea.vmem %s0, %s187
          %s189 = smul.u32 4, %s14
        $region36: #{simple_policy_forward_t.1} parent=31 // pred_fallthru
          _
      $region32: #{simple_policy_forward_t.1} parent=5 // pred_fallthru
        _
      %p190 = scmp.le.s32.totalorder 1, %s14
      %p191 = scmp.lt.s32.totalorder %s14, 3
      %p192 = pnand %p190, %p191
      %p193 = pneg %p192
      // Predicated region
      $region37: #{simple_policy_forward_t.1} parent=5 // pred_check
        _
      $region38: #{simple_policy_forward_t.1} parent=5 // pred_check_branch
        %195 = sbr.rel (%p192) target = $region40
      $region39: #{simple_policy_forward_t.1} parent=5 // pred_region
        %s196 = ssub.s32 %s14, 1
        %s197 = smul.u32 4, %s19
        %p198 = scmp.lt.s32.totalorder %s197, 7
        %s199 = scalar_select %p198, %s197, 7
        %s200 = smul.addr %s199, 2
        %s201 = scalar_lea.vmem %s0, %s200
        %p202 = pneg %p40
        %p203 = pneg %p37
        %p204 = pneg %p61
        %p205 = pneg %p58
        %p206 = pneg %p82
        %p207 = pneg %p79
        %p208 = pneg %p103
        %p209 = pneg %p100
        %p210 = pneg %p124
        %p211 = pneg %p121
        %p212 = pneg %p150
        %p213 = pneg %p147
        %s214 = sand.u32 %s137, 1
        %s215 = scalar_lea.sflag [#allocation3], %s214
        %s216 = sand.u32 %s137, 1
        %s217 = smul.addr %s216, 8
        %s218 = scalar_lea.vmem [#allocation2], %s217
        %s219 = smul.u32 4, %s19
        %p220 = scmp.lt.s32.totalorder %s219, 7
        %s221 = scalar_select %p220, %s219, 7
        %s222 = smul.addr %s221, 2
        %s223 = scalar_lea.vmem %s0, %s222
        %s224 = smul.u32 4, %s19
        %s225 = smul.u32 4, %s19
        %v227 = vld [vmem:[%s1] sm:$0xf]
        %v228 = vld [vmem:[%s1 + $0x4] sm:$0xf]
        %v229 = vld [vmem:[%s223] sm:$0xff]
        %v230 = vld [vmem:[%s2] sm:$0xff]
        %v231 = vld [vmem:[%s2 + $0x8] sm:$0xff]
        %233 = vset.pattern.permute.xlu0 0
        %234 = vperm.xlu0 %233, %v230
        %v235 = vpop.permute.xlu0 %234
        %238 = vset.pattern.permute.xlu0 0
        %239 = vperm.xlu0 %238, %v231
        %v240 = vpop.permute.xlu0 %239
        %v244 = vunpack.c.l.b16 %v227
        %v245 = vunpack.c.l.b16 %v228
        %v246 = vpack.c.b16 %v245, %v244
        %v248 = vcombine.high %v229, %v229
        %v250 = vunpack.c.l.s4 1983009808
        %v251 = vunpack.c.0.s8 %v250
        %v252 = vlaneseq
        %v253 = vshrl.u32 %v252, 7
        %v254 = vsub.s32 %v251, %v253
        %v255 = vrot.slane %v229, %v254
        %v257 = vunpack.c.l.s4 1983009808
        %v258 = vunpack.c.0.s8 %v257
        %v259 = vlaneseq
        %v260 = vshrl.u32 %v259, 7
        %v261 = vsub.s32 %v258, %v260
        %v262 = vrot.slane %v248, %v261
        %v263 = vcombine.high %v255, %v255
        %v264 = vcombine.high %v262, %v262
        %vm265 = vcmask 31744
        %v267 = vsel %vm265, %v246, 0
        %vm269 = vcmask 1041408
        %v271 = vsel %vm269, %v255, 0
        %v274 = vsel %vm269, %v263, 0
        %v277 = vsel %vm269, %v262, 0
        %v280 = vsel %vm269, %v264, 0
        %282 = vmatprep.subr.bf16.mxu0 0
        %283 = vmatpush1.bf16.msra.mxu0 0
        %284 = vmatprep.subr.bf16.mxu0 0
        %285 = vmatpush1.bf16.msra.mxu0 0
        %286 = vmatprep.subr.bf16.mxu0 0
        %287 = vmatpush1.bf16.msra.mxu0 0
        %288 = vmatprep.subr.bf16.mxu0 0
        %289 = vmatpush1.bf16.msra.mxu0 0
        %290 = vmatprep.subr.bf16.mxu0 0
        %291 = vmatpush1.bf16.msra.mxu0 0
        %292 = vmatprep.subr.bf16.mxu0 0
        %293 = vmatpush1.bf16.msra.mxu0 0
        %294 = vmatprep.subr.bf16.mxu0 0
        %295 = vmatpush1.bf16.msra.mxu0 0
        %296 = vmatprep.subr.bf16.mxu0 %v274
        %297 = vmatpush1.bf16.msra.mxu0 %v271
        %298 = vmatprep.subr.bf16.mxu0 0
        %299 = vmatpush2.bf16.msra.mxu0 0
        %300 = vmatprep.subr.bf16.mxu0 0
        %301 = vmatpush2.bf16.msra.mxu0 0
        %302 = vmatprep.subr.bf16.mxu0 0
        %303 = vmatpush2.bf16.msra.mxu0 0
        %304 = vmatprep.subr.bf16.mxu0 0
        %305 = vmatpush2.bf16.msra.mxu0 0
        %306 = vmatprep.subr.bf16.mxu0 0
        %307 = vmatpush2.bf16.msra.mxu0 0
        %308 = vmatprep.subr.bf16.mxu0 0
        %309 = vmatpush2.bf16.msra.mxu0 0
        %310 = vmatprep.subr.bf16.mxu0 0
        %311 = vmatpush2.bf16.msra.mxu0 0
        %312 = vmatprep.subr.bf16.mxu0 0
        %313 = vmatpush2.bf16.msra.mxu0 0
        %314 = vmatprep.mubr.bf16.mxu0 0
        %315 = vmatmul.mubr.bf16.gmra.mxu0 %v267
        %v316 = vpop.f32.mrf.mxu0
        %v317 = vadd.f32 %v235, %v316
        %v318 = vpop.f32.mrf.mxu0
        %v319 = vadd.f32 %v235, %v318
        %v320 = vpop.f32.mrf.mxu0
        %v321 = vadd.f32 %v240, %v320
        %v322 = vpop.f32.mrf.mxu0
        %v323 = vadd.f32 %v240, %v322
        %324 = vdwg.mxu0
        %325 = vmatprep.subr.bf16.mxu0 0
        %326 = vmatpush1.bf16.msra.mxu0 0
        %327 = vmatprep.subr.bf16.mxu0 0
        %328 = vmatpush1.bf16.msra.mxu0 0
        %329 = vmatprep.subr.bf16.mxu0 0
        %330 = vmatpush1.bf16.msra.mxu0 0
        %331 = vmatprep.subr.bf16.mxu0 0
        %332 = vmatpush1.bf16.msra.mxu0 0
        %333 = vmatprep.subr.bf16.mxu0 0
        %334 = vmatpush1.bf16.msra.mxu0 0
        %335 = vmatprep.subr.bf16.mxu0 0
        %336 = vmatpush1.bf16.msra.mxu0 0
        %337 = vmatprep.subr.bf16.mxu0 0
        %338 = vmatpush1.bf16.msra.mxu0 0
        %339 = vmatprep.subr.bf16.mxu0 %v280
        %340 = vmatpush1.bf16.msra.mxu0 %v277
        %341 = vmatprep.subr.bf16.mxu0 0
        %342 = vmatpush2.bf16.msra.mxu0 0
        %343 = vmatprep.subr.bf16.mxu0 0
        %344 = vmatpush2.bf16.msra.mxu0 0
        %345 = vmatprep.subr.bf16.mxu0 0
        %346 = vmatpush2.bf16.msra.mxu0 0
        %347 = vmatprep.subr.bf16.mxu0 0
        %348 = vmatpush2.bf16.msra.mxu0 0
        %349 = vmatprep.subr.bf16.mxu0 0
        %350 = vmatpush2.bf16.msra.mxu0 0
        %351 = vmatprep.subr.bf16.mxu0 0
        %352 = vmatpush2.bf16.msra.mxu0 0
        %353 = vmatprep.subr.bf16.mxu0 0
        %354 = vmatpush2.bf16.msra.mxu0 0
        %355 = vmatprep.subr.bf16.mxu0 0
        %356 = vmatpush2.bf16.msra.mxu0 0
        %357 = vmatprep.mubr.bf16.mxu0 0
        %358 = vmatmul.mubr.bf16.gmra.mxu0 %v267
        %v359 = vpop.f32.mrf.mxu0
        %v360 = vadd.f32 %v235, %v359
        %v361 = vpop.f32.mrf.mxu0
        %v362 = vadd.f32 %v235, %v361
        %v363 = vpop.f32.mrf.mxu0
        %v364 = vadd.f32 %v240, %v363
        %v365 = vpop.f32.mrf.mxu0
        %v366 = vadd.f32 %v240, %v365
        %367 = vdwg.mxu0
        %v368 = vmax.f32 %v317, 0.0
        %v369 = vmax.f32 %v319, 0.0
        %v370 = vmax.f32 %v360, 0.0
        %v371 = vmax.f32 %v362, 0.0
        %v372 = vmax.f32 %v321, 0.0
        %v373 = vmax.f32 %v323, 0.0
        %v374 = vmax.f32 %v364, 0.0
        %v375 = vmax.f32 %v366, 0.0
        %v376 = vld [vmem:[%s3] sm:$0x1]
        %v377 = vpack.c.bf16 %v372, %v368
        %v378 = vpack.c.bf16 %v373, %v369
        %v379 = vpack.c.bf16 %v374, %v370
        %v380 = vpack.c.bf16 %v375, %v371
        %v381 = vld [vmem:[%s4] sm:$0x3]
        %383 = vset.pattern.permute.xlu0 0
        %384 = vperm.xlu0 %383, %v381
        %v385 = vpop.permute.xlu0 %384
        %vm387 = vcmask 130048
        %v389 = vsel %vm387, %v376, 0
        %391 = vmatprep.subr.bf16.mxu0 0
        %392 = vmatpush1.bf16.msra.mxu0 0
        %393 = vmatprep.subr.bf16.mxu0 0
        %394 = vmatpush1.bf16.msra.mxu0 0
        %395 = vmatprep.subr.bf16.mxu0 0
        %396 = vmatpush1.bf16.msra.mxu0 0
        %397 = vmatprep.subr.bf16.mxu0 0
        %398 = vmatpush1.bf16.msra.mxu0 0
        %399 = vmatprep.subr.bf16.mxu0 0
        %400 = vmatpush1.bf16.msra.mxu0 0
        %401 = vmatprep.subr.bf16.mxu0 0
        %402 = vmatpush1.bf16.msra.mxu0 0
        %403 = vmatprep.subr.bf16.mxu0 0
        %404 = vmatpush1.bf16.msra.mxu0 0
        %405 = vmatprep.subr.bf16.mxu0 %v378
        %406 = vmatpush1.bf16.msra.mxu0 %v377
        %407 = vmatprep.subr.bf16.mxu0 0
        %408 = vmatpush2.bf16.msra.mxu0 0
        %409 = vmatprep.subr.bf16.mxu0 0
        %410 = vmatpush2.bf16.msra.mxu0 0
        %411 = vmatprep.subr.bf16.mxu0 0
        %412 = vmatpush2.bf16.msra.mxu0 0
        %413 = vmatprep.subr.bf16.mxu0 0
        %414 = vmatpush2.bf16.msra.mxu0 0
        %415 = vmatprep.subr.bf16.mxu0 0
        %416 = vmatpush2.bf16.msra.mxu0 0
        %417 = vmatprep.subr.bf16.mxu0 0
        %418 = vmatpush2.bf16.msra.mxu0 0
        %419 = vmatprep.subr.bf16.mxu0 0
        %420 = vmatpush2.bf16.msra.mxu0 0
        %421 = vmatprep.subr.bf16.mxu0 0
        %422 = vmatpush2.bf16.msra.mxu0 0
        %423 = vmatprep.mubr.bf16.mxu0 0
        %424 = vmatmul.mubr.bf16.gmra.mxu0 %v389
        %v425 = vpop.f32.mrf.mxu0
        %v426 = vadd.f32 %v385, %v425
        %v427 = vpop.f32.mrf.mxu0
        %v428 = vadd.f32 %v385, %v427
        %v429 = vpop.f32.mrf.mxu0
        %v430 = vpop.f32.mrf.mxu0
        %431 = vdwg.mxu0
        %432 = vmatprep.subr.bf16.mxu0 0
        %433 = vmatpush1.bf16.msra.mxu0 0
        %434 = vmatprep.subr.bf16.mxu0 0
        %435 = vmatpush1.bf16.msra.mxu0 0
        %436 = vmatprep.subr.bf16.mxu0 0
        %437 = vmatpush1.bf16.msra.mxu0 0
        %438 = vmatprep.subr.bf16.mxu0 0
        %439 = vmatpush1.bf16.msra.mxu0 0
        %440 = vmatprep.subr.bf16.mxu0 0
        %441 = vmatpush1.bf16.msra.mxu0 0
        %442 = vmatprep.subr.bf16.mxu0 0
        %443 = vmatpush1.bf16.msra.mxu0 0
        %444 = vmatprep.subr.bf16.mxu0 0
        %445 = vmatpush1.bf16.msra.mxu0 0
        %446 = vmatprep.subr.bf16.mxu0 %v380
        %447 = vmatpush1.bf16.msra.mxu0 %v379
        %448 = vmatprep.subr.bf16.mxu0 0
        %449 = vmatpush2.bf16.msra.mxu0 0
        %450 = vmatprep.subr.bf16.mxu0 0
        %451 = vmatpush2.bf16.msra.mxu0 0
        %452 = vmatprep.subr.bf16.mxu0 0
        %453 = vmatpush2.bf16.msra.mxu0 0
        %454 = vmatprep.subr.bf16.mxu0 0
        %455 = vmatpush2.bf16.msra.mxu0 0
        %456 = vmatprep.subr.bf16.mxu0 0
        %457 = vmatpush2.bf16.msra.mxu0 0
        %458 = vmatprep.subr.bf16.mxu0 0
        %459 = vmatpush2.bf16.msra.mxu0 0
        %460 = vmatprep.subr.bf16.mxu0 0
        %461 = vmatpush2.bf16.msra.mxu0 0
        %462 = vmatprep.subr.bf16.mxu0 0
        %463 = vmatpush2.bf16.msra.mxu0 0
        %464 = vmatprep.mubr.bf16.mxu0 0
        %465 = vmatmul.mubr.bf16.gmra.mxu0 %v389
        %v466 = vpop.f32.mrf.mxu0
        %v467 = vadd.f32 %v385, %v466
        %v468 = vpop.f32.mrf.mxu0
        %v469 = vadd.f32 %v385, %v468
        %v470 = vpop.f32.mrf.mxu0
        %v471 = vpop.f32.mrf.mxu0
        %472 = vdwg.mxu0
        %v477 = vrot.slane %v426, 1
        %v478 = vrot.slane %v428, 1
        %v479 = vrot.slane %v467, 1
        %v480 = vrot.slane %v469, 1
        %v485 = vmax.f32 %v426, %v477
        %v486 = vmax.f32 %v428, %v478
        %v487 = vmax.f32 %v467, %v479
        %v488 = vmax.f32 %v469, %v480
        %v489 = vlaneseq
        %v490 = vshrl.u32 %v489, 7
        %v491 = vsub.s32 0, %v490
        %v492 = vrot.slane %v485, %v491
        %v493 = vlaneseq
        %v494 = vshrl.u32 %v493, 7
        %v495 = vsub.s32 0, %v494
        %v496 = vrot.slane %v486, %v495
        %v497 = vlaneseq
        %v498 = vshrl.u32 %v497, 7
        %v499 = vsub.s32 0, %v498
        %v500 = vrot.slane %v487, %v499
        %v501 = vlaneseq
        %v502 = vshrl.u32 %v501, 7
        %v503 = vsub.s32 0, %v502
        %v504 = vrot.slane %v488, %v503
        %v505 = vsub.f32 %v426, %v492
        %v506 = vsub.f32 %v428, %v496
        %v507 = vsub.f32 %v467, %v500
        %v508 = vsub.f32 %v469, %v504
        %v509 = vmul.f32 %v505, 1.442695
        %v510 = vpow.pop %v509
        %v511 = vmul.f32 %v506, 1.442695
        %v512 = vpow.pop %v511
        %v513 = vmul.f32 %v507, 1.442695
        %v514 = vpow.pop %v513
        %v515 = vmul.f32 %v508, 1.442695
        %v516 = vpow.pop %v515
        %v521 = vrot.slane %v510, 1
        %v522 = vrot.slane %v512, 1
        %v523 = vrot.slane %v514, 1
        %v524 = vrot.slane %v516, 1
        %v529 = vadd.f32 %v510, %v521
        %v530 = vadd.f32 %v512, %v522
        %v531 = vadd.f32 %v514, %v523
        %v532 = vadd.f32 %v516, %v524
        %v533 = vlaneseq
        %v534 = vshrl.u32 %v533, 7
        %v535 = vsub.s32 0, %v534
        %v536 = vrot.slane %v529, %v535
        %v537 = vlaneseq
        %v538 = vshrl.u32 %v537, 7
        %v539 = vsub.s32 0, %v538
        %v540 = vrot.slane %v530, %v539
        %v541 = vlaneseq
        %v542 = vshrl.u32 %v541, 7
        %v543 = vsub.s32 0, %v542
        %v544 = vrot.slane %v531, %v543
        %v545 = vlaneseq
        %v546 = vshrl.u32 %v545, 7
        %v547 = vsub.s32 0, %v546
        %v548 = vrot.slane %v532, %v547
        %v549 = vrcp.pop %v536
        %v550 = vmul.f32 %v510, %v549
        %v551 = vrcp.pop %v540
        %v552 = vmul.f32 %v512, %v551
        %v553 = vrcp.pop %v544
        %v554 = vmul.f32 %v514, %v553
        %v555 = vrcp.pop %v548
        %v556 = vmul.f32 %v516, %v555
        %v561 = vcombine.low %v550, %v552
        %v562 = vcombine.low %v554, %v556
        %v564 = vunpack.c.l.s4 1983009808
        %v565 = vunpack.c.0.s8 %v564
        %v566 = vlaneseq
        %v567 = vshrl.u32 %v566, 7
        %v568 = vsub.s32 %v565, %v567
        %v569 = vrot.slane %v561, %v568
        %v571 = vunpack.c.l.s4 1983009808
        %v572 = vunpack.c.0.s8 %v571
        %v573 = vlaneseq
        %v574 = vshrl.u32 %v573, 7
        %v575 = vsub.s32 %v572, %v574
        %v576 = vrot.slane %v562, %v575
        %v577 = vcombine.low %v569, %v576
        %579 = vst [vmem:[%s218] sm:$0xff] %v577
        %s580 = sand.u32 %s137, 1
        %s581 = scalar_lea.sflag [#allocation3], %s580
        %s582 = sand.u32 %s137, 1
        %s583 = smul.addr %s582, 8
        %s584 = scalar_lea.vmem [#allocation2], %s583
        // Predicated region
        $region41: #{simple_policy_forward_t.1} parent=39 // pred_check
          %p585 = pneg %p147
        $region42: #{simple_policy_forward_t.1} parent=39 // pred_check_branch
          %587 = sbr.rel (%p585) target = $region44
        $region43: #{simple_policy_forward_t.1} parent=39 // pred_region
          %s588 = smul.u32 4, %s19
          %s590 = ssub.s32 128, 128
          %591 = vsyncadd %s581, %s590
          %s592 = smul.addr %s588, 32
          %s593 = scalar_lea.hbm %s5, %s592
          %s595 = sshll.u32 %s584, 4
          %s596 = int_to_ptr.vmem [resolvable:$true] %s595
          %598 = dma.vmem_to_hbm [thread:$0]  %s596, 128, %s593, %s581
        $region44: #{simple_policy_forward_t.1} parent=39 // pred_fallthru
          _
      $region40: #{simple_policy_forward_t.1} parent=5 // pred_fallthru
        _
      %p599 = scmp.le.s32.totalorder 2, %s14
      // Predicated region
      $region45: #{simple_policy_forward_t.1} parent=5 // pred_check
        %p600 = pneg %p599
      $region46: #{simple_policy_forward_t.1} parent=5 // pred_check_branch
        %602 = sbr.rel (%p600) target = $region48
      $region47: #{simple_policy_forward_t.1} parent=5 // pred_region
        %s603 = ssub.s32 %s14, 2
        // Predicated region
        $region49: #{simple_policy_forward_t.1} parent=47 // pred_check
          %p604 = pneg %p153
        $region50: #{simple_policy_forward_t.1} parent=47 // pred_check_branch
          %606 = sbr.rel (%p604) target = $region52
        $region51: #{simple_policy_forward_t.1} parent=47 // pred_region
          %s607 = sand.u32 %s138, 1
          %s608 = scalar_lea.sflag [#allocation3], %s607
          %s609 = sand.u32 %s138, 1
          %s610 = smul.addr %s609, 8
          %s611 = scalar_lea.vmem [#allocation2], %s610
          %612 = dma.done %s608, 128
        $region52: #{simple_policy_forward_t.1} parent=47 // pred_fallthru
          _
      $region48: #{simple_policy_forward_t.1} parent=5 // pred_fallthru
        _
    $region6: #{simple_policy_forward_t.1} parent=1 // loop_footer
      %s18 = sadd.s32 1, %s14
    $region7: #{simple_policy_forward_t.1} parent=1 // loop_footer_branch
      %13 = sbr.rel target = $region3
    $region8: #{simple_policy_forward_t.1} parent=1 // loop_exit
      _
    %613 = vsyncpa [#allocation3], 1
    %s614 = scalar_lea.sflag [#allocation3], 1
    %615 = vsyncpa %s614, 1

</llo_original>
